<compile_context>
chip_gen: v7x
topology: tpu7x:2x2x1
jax: 0.10.0
libtpu: 0.0.40
codegen_flags: <defaults>
</compile_context>

<pallas_src>
import jax
import jax.numpy as jnp
from jax.experimental import pallas as pl
from jax.experimental.pallas import tpu as pltpu

_SUB = 8                    # sublanes used for batch packing
_MIN_TILE = _SUB * 128      # smallest tile: one (8, 128) vreg of samples


def _round_up(x: int, m: int) -> int:
    return ((x + m - 1) // m) * m


def _make_kernel(num_classes: int, smoothing: float, confidence: float,
                 lw: int, tile: int, n_valid: int, has_pad: bool):
    # NOTE: all closure values below are plain Python scalars (inlined as
    # literals) — never jnp arrays, which pallas_call would reject as
    # captured constants.
    half = float(smoothing) / 2.0
    conf = float(confidence)
    base = conf + float(smoothing)     # sum of weights for interior targets
    last_idx = 4
    # TODO(synk): the original module hardcodes the upper clamp at 4 regardless
    # of `classes`; we reproduce that quirk faithfully (only exact for C == 5).
    n_chunks = lw // 128

    def kernel(tgt_ref, pred_ref, out_ref):
        # tgt_ref : (8, LW)    int32   batch packed over sublanes x lanes
        # pred_ref: (C, 8, LW) native dtype (e.g. bf16)
        # out_ref : (8, 128)   f32     per-tile partial sum of sample losses
        pid = pl.program_id(0)
        acc = jnp.zeros((_SUB, 128), jnp.float32)

        # Unrolled loop over 128-lane chunks keeps every intermediate at one
        # (8, 128) vreg -> no spill pressure even for very large tiles.
        for g in range(n_chunks):
            lo = g * 128
            tgt = tgt_ref[:, lo:lo + 128]                       # (8,128) int32
            prev_idx = jnp.maximum(tgt - 1, 0)
            next_idx = jnp.minimum(tgt + 1, last_idx)

            # Per-class logits, cast to f32 only at point of use.
            p = [pred_ref[c, :, lo:lo + 128].astype(jnp.float32)
                 for c in range(num_classes)]

            # log-sum-exp over the tiny static class axis (pure VPU/EUP work,
            # no cross-lane reductions).
            m = p[0]
            for c in range(1, num_classes):
                m = jnp.maximum(m, p[c])
            se = jnp.exp(p[0] - m)
            for c in range(1, num_classes):
                se = se + jnp.exp(p[c] - m)
            lse = m + jnp.log(se)                               # (8,128) f32

            # sum_c w_c * pred_c, with
            #   w_c = confidence            where c == target (scattered last)
            #       = smoothing/2           where c == prev or c == next
            #       = 0                     otherwise
            wp = jnp.zeros_like(lse)
            for c in range(num_classes):
                w_c = jnp.where(
                    tgt == c, conf,
                    jnp.where((prev_idx == c) | (next_idx == c), half, 0.0))
                wp = wp + w_c * p[c]

            # sum_c w_c in closed form: interior targets get conf + s, edge
            # targets (0 or last) lose one s/2 to the clamp collision that the
            # confidence scatter overwrites.
            edge = ((tgt == 0) | (tgt == last_idx)).astype(jnp.float32)
            sumw = base - half * edge

            # loss_j = sum_c -w_c * (pred_c - lse) = sumw*lse - sum_c w_c*pred_c
            loss = sumw * lse - wp                              # (8,128) f32

            if has_pad:
                # Mask padded samples (only the last tile can contain padding,
                # but the handful of extra VPU ops is negligible per sample).
                s_iota = jax.lax.broadcasted_iota(jnp.int32, (_SUB, 128), 0)
                l_iota = jax.lax.broadcasted_iota(jnp.int32, (_SUB, 128), 1)
                idx = pid * tile + s_iota * lw + lo + l_iota
                loss = jnp.where(idx < n_valid, loss, 0.0)

            acc = acc + loss

        out_ref[...] = acc

    return kernel


def _choose_tile(n: int, tile_n: int) -> int:
    """Tile size in samples: multiple of 1024, big enough to amortize grid
    overhead, small enough that mid-sized batches still yield >= 2 tiles
    (so both v7x TensorCores get work)."""
    n_min_pad = _round_up(n, _MIN_TILE)
    tile = _round_up(max(min(tile_n, n_min_pad), _MIN_TILE), _MIN_TILE)
    if n_min_pad >= 2 * _MIN_TILE:
        tile = min(tile, _round_up(n_min_pad // 2, _MIN_TILE))
    return tile


def gaussian_label_smoothing_loss(pred, target, classes: int,
                                  smoothing: float = 0.0,
                                  tile_n: int = 32768):
    """pred: (N, C) float logits (any float dtype), target: (N,) int labels.

    Returns the scalar f32 loss, identical to the PyTorch module's forward.
    """
    confidence = 1.0 - smoothing
    N, C = pred.shape
    assert C == classes

    tile = _choose_tile(N, tile_n)
    n_pad = _round_up(N, tile)
    num_tiles = n_pad // tile
    lw = tile // _SUB                     # lanes per sublane row (multiple of 128)
    has_pad = n_pad != N

    # Lane/sublane-dense layout: classes -> leading axis, batch packed over
    # (sublane, lane).  pred stays in its native dtype (bf16 halves HBM bytes).
    # TODO(synk): in a real pipeline the producer should emit pred directly as
    # (C, N_pad) (or (C, rows, LW)); the transpose+pad below is a one-time XLA
    # copy kept only so this script accepts the PyTorch-style (N, C) input.
    pred_t = jnp.transpose(pred)                         # (C, N)
    tgt = target.astype(jnp.int32)                       # (N,)
    if has_pad:
        pred_t = jnp.pad(pred_t, ((0, 0), (0, n_pad - N)))
        tgt = jnp.pad(tgt, (0, n_pad - N))
    pred_r = pred_t.reshape(C, num_tiles * _SUB, lw)     # (C, T*8, LW)
    tgt_r = tgt.reshape(num_tiles * _SUB, lw)            # (T*8, LW)

    partials = pl.pallas_call(
        _make_kernel(C, smoothing, confidence, lw, tile, N, has_pad),
        out_shape=jax.ShapeDtypeStruct((num_tiles * _SUB, 128), jnp.float32),
        grid=(num_tiles,),
        in_specs=[
            pl.BlockSpec((_SUB, lw), lambda i: (i, 0)),        # target tile
            pl.BlockSpec((C, _SUB, lw), lambda i: (0, i, 0)),  # pred tile
        ],
        out_specs=pl.BlockSpec((_SUB, 128), lambda i: (i, 0)), # per-tile partials
        compiler_params=pltpu.CompilerParams(
            dimension_semantics=("parallel",)),
    )(tgt_r, pred_r)

    # Tiny final reduction over (num_tiles*8, 128) f32 partials.
    return jnp.sum(partials) / N


def _reference(pred, target, smoothing):
    """Plain-JAX reference replicating the PyTorch forward exactly."""
    confidence = 1.0 - smoothing
    logp = jax.nn.log_softmax(pred.astype(jnp.float32), axis=-1)
    N, C = pred.shape
    col = jnp.arange(C)[None, :]
    tgt = target[:, None]
    prev_idx = jnp.maximum(tgt - 1, 0)
    next_idx = jnp.minimum(tgt + 1, 4)
    td = jnp.zeros_like(logp)
    td = jnp.where(col == prev_idx, smoothing / 2, td)
    td = jnp.where(col == next_idx, smoothing / 2, td)
    td = jnp.where(col == tgt, confidence, td)
    return jnp.mean(jnp.sum(-td * logp, axis=-1))


if __name__ == "__main__":
    key = jax.random.PRNGKey(0)
    k1, k2, k3, k4 = jax.random.split(key, 4)

    C = 5            # the module hardcodes clamp at index 4 => 5 classes
    smoothing = 0.1

    # Small case (single padded tile, heavy tail masking).
    N1 = 8
    pred1 = jax.random.normal(k1, (N1, C), dtype=jnp.float32)
    tgt1 = jax.random.randint(k2, (N1,), 0, C, dtype=jnp.int32)
    loss1 = gaussian_label_smoothing_loss(pred1, tgt1, classes=C,
                                          smoothing=smoothing)
    loss1 = jax.block_until_ready(loss1)
    ref1 = _reference(pred1, tgt1, smoothing)
    assert jnp.allclose(loss1, ref1, atol=1e-5, rtol=1e-5), (loss1, ref1)

    # Multi-tile + ragged-tail case (3 grid steps with tile_n=1024).
    N2 = 2500
    pred2 = jax.random.normal(k3, (N2, C), dtype=jnp.float32)
    tgt2 = jax.random.randint(k4, (N2,), 0, C, dtype=jnp.int32)
    loss2 = gaussian_label_smoothing_loss(pred2, tgt2, classes=C,
                                          smoothing=smoothing, tile_n=1024)
    loss2 = jax.block_until_ready(loss2)
    ref2 = _reference(pred2, tgt2, smoothing)
    assert jnp.allclose(loss2, ref2, atol=1e-5, rtol=1e-5), (loss2, ref2)

    # bf16 logits path (pred stays bf16 in HBM; f32 math inside the kernel),
    # default tile selection -> 2 tiles (v7x two-TC path) + multi-chunk loop.
    pred3 = pred2.astype(jnp.bfloat16)
    loss3 = gaussian_label_smoothing_loss(pred3, tgt2, classes=C,
                                          smoothing=smoothing)
    loss3 = jax.block_until_ready(loss3)
    ref3 = _reference(pred3.astype(jnp.float32), tgt2, smoothing)
    assert jnp.allclose(loss3, ref3, atol=2e-3, rtol=2e-3), (loss3, ref3)

    print("KERNEL_OK")
</pallas_src>

<mosaic_0001>
module attributes {stable_mosaic.version = 11 : i64} {
  func.func @kernel(%arg0: i32, %arg1: memref<8x128xi32, #tpu.memory_space<vmem>>, %arg2: memref<5x8x128xf32, #tpu.memory_space<vmem>>, %arg3: memref<8x128xf32, #tpu.memory_space<vmem>>) attributes {dimension_semantics = [#tpu.dimension_semantics<parallel>], iteration_bounds = array<i64: 1>, scalar_prefetch = 0 : i64, scratch_operands = 0 : i64, tpu.core_type = #tpu.core_type<tc>, window_params = [{transform_indices = @transform_0, window_bounds = array<i64: 8, 128>}, {transform_indices = @transform_1, window_bounds = array<i64: 5, 8, 128>}, {transform_indices = @transform_2, window_bounds = array<i64: 8, 128>}]} {
    %cst = arith.constant 0.000000e+00 : f32
    %0 = vector.broadcast %cst : f32 to vector<8x128xf32>
    %c0 = arith.constant 0 : index
    %c0_0 = arith.constant 0 : index
    %1 = vector.load %arg1[%c0, %c0_0] : memref<8x128xi32, #tpu.memory_space<vmem>>, vector<8x128xi32>
    %c1_i32 = arith.constant 1 : i32
    %2 = vector.broadcast %c1_i32 : i32 to vector<8x128xi32>
    %3 = arith.subi %1, %2 : vector<8x128xi32>
    %c0_i32 = arith.constant 0 : i32
    %4 = vector.broadcast %c0_i32 : i32 to vector<8x128xi32>
    %5 = arith.maxsi %3, %4 : vector<8x128xi32>
    %c1_i32_1 = arith.constant 1 : i32
    %6 = vector.broadcast %c1_i32_1 : i32 to vector<8x128xi32>
    %7 = arith.addi %1, %6 : vector<8x128xi32>
    %c4_i32 = arith.constant 4 : i32
    %8 = vector.broadcast %c4_i32 : i32 to vector<8x128xi32>
    %9 = arith.minsi %7, %8 : vector<8x128xi32>
    %c0_2 = arith.constant 0 : index
    %c0_3 = arith.constant 0 : index
    %c0_4 = arith.constant 0 : index
    %10 = vector.load %arg2[%c0_2, %c0_3, %c0_4] : memref<5x8x128xf32, #tpu.memory_space<vmem>>, vector<1x8x128xf32>
    %11 = vector.shape_cast %10 : vector<1x8x128xf32> to vector<8x128xf32>
    %c1 = arith.constant 1 : index
    %c0_5 = arith.constant 0 : index
    %c0_6 = arith.constant 0 : index
    %12 = vector.load %arg2[%c1, %c0_5, %c0_6] : memref<5x8x128xf32, #tpu.memory_space<vmem>>, vector<1x8x128xf32>
    %13 = vector.shape_cast %12 : vector<1x8x128xf32> to vector<8x128xf32>
    %c2 = arith.constant 2 : index
    %c0_7 = arith.constant 0 : index
    %c0_8 = arith.constant 0 : index
    %14 = vector.load %arg2[%c2, %c0_7, %c0_8] : memref<5x8x128xf32, #tpu.memory_space<vmem>>, vector<1x8x128xf32>
    %15 = vector.shape_cast %14 : vector<1x8x128xf32> to vector<8x128xf32>
    %c3 = arith.constant 3 : index
    %c0_9 = arith.constant 0 : index
    %c0_10 = arith.constant 0 : index
    %16 = vector.load %arg2[%c3, %c0_9, %c0_10] : memref<5x8x128xf32, #tpu.memory_space<vmem>>, vector<1x8x128xf32>
    %17 = vector.shape_cast %16 : vector<1x8x128xf32> to vector<8x128xf32>
    %c4 = arith.constant 4 : index
    %c0_11 = arith.constant 0 : index
    %c0_12 = arith.constant 0 : index
    %18 = vector.load %arg2[%c4, %c0_11, %c0_12] : memref<5x8x128xf32, #tpu.memory_space<vmem>>, vector<1x8x128xf32>
    %19 = vector.shape_cast %18 : vector<1x8x128xf32> to vector<8x128xf32>
    %20 = arith.maximumf %11, %13 : vector<8x128xf32>
    %21 = arith.maximumf %20, %15 : vector<8x128xf32>
    %22 = arith.maximumf %21, %17 : vector<8x128xf32>
    %23 = arith.maximumf %22, %19 : vector<8x128xf32>
    %24 = arith.subf %11, %23 : vector<8x128xf32>
    %25 = math.exp %24 : vector<8x128xf32>
    %26 = arith.subf %13, %23 : vector<8x128xf32>
    %27 = math.exp %26 : vector<8x128xf32>
    %28 = arith.addf %25, %27 : vector<8x128xf32>
    %29 = arith.subf %15, %23 : vector<8x128xf32>
    %30 = math.exp %29 : vector<8x128xf32>
    %31 = arith.addf %28, %30 : vector<8x128xf32>
    %32 = arith.subf %17, %23 : vector<8x128xf32>
    %33 = math.exp %32 : vector<8x128xf32>
    %34 = arith.addf %31, %33 : vector<8x128xf32>
    %35 = arith.subf %19, %23 : vector<8x128xf32>
    %36 = math.exp %35 : vector<8x128xf32>
    %37 = arith.addf %34, %36 : vector<8x128xf32>
    %38 = math.log %37 : vector<8x128xf32>
    %39 = arith.addf %23, %38 : vector<8x128xf32>
    %cst_13 = arith.constant 0.000000e+00 : f32
    %40 = vector.broadcast %cst_13 : f32 to vector<8x128xf32>
    %c0_i32_14 = arith.constant 0 : i32
    %41 = vector.broadcast %c0_i32_14 : i32 to vector<8x128xi32>
    %42 = arith.cmpi eq, %1, %41 : vector<8x128xi32>
    %c0_i32_15 = arith.constant 0 : i32
    %43 = vector.broadcast %c0_i32_15 : i32 to vector<8x128xi32>
    %44 = arith.cmpi eq, %5, %43 : vector<8x128xi32>
    %c0_i32_16 = arith.constant 0 : i32
    %45 = vector.broadcast %c0_i32_16 : i32 to vector<8x128xi32>
    %46 = arith.cmpi eq, %9, %45 : vector<8x128xi32>
    %47 = arith.ori %44, %46 : vector<8x128xi1>
    %cst_17 = arith.constant 5.000000e-02 : f32
    %cst_18 = arith.constant 0.000000e+00 : f32
    %48 = vector.broadcast %cst_17 : f32 to vector<8x128xf32>
    %49 = vector.broadcast %cst_18 : f32 to vector<8x128xf32>
    %50 = arith.select %47, %48, %49 : vector<8x128xi1>, vector<8x128xf32>
    %cst_19 = arith.constant 0.899999976 : f32
    %51 = vector.broadcast %cst_19 : f32 to vector<8x128xf32>
    %52 = arith.select %42, %51, %50 : vector<8x128xi1>, vector<8x128xf32>
    %53 = arith.mulf %52, %11 : vector<8x128xf32>
    %54 = arith.addf %40, %53 : vector<8x128xf32>
    %c1_i32_20 = arith.constant 1 : i32
    %55 = vector.broadcast %c1_i32_20 : i32 to vector<8x128xi32>
    %56 = arith.cmpi eq, %1, %55 : vector<8x128xi32>
    %c1_i32_21 = arith.constant 1 : i32
    %57 = vector.broadcast %c1_i32_21 : i32 to vector<8x128xi32>
    %58 = arith.cmpi eq, %5, %57 : vector<8x128xi32>
    %c1_i32_22 = arith.constant 1 : i32
    %59 = vector.broadcast %c1_i32_22 : i32 to vector<8x128xi32>
    %60 = arith.cmpi eq, %9, %59 : vector<8x128xi32>
    %61 = arith.ori %58, %60 : vector<8x128xi1>
    %cst_23 = arith.constant 5.000000e-02 : f32
    %cst_24 = arith.constant 0.000000e+00 : f32
    %62 = vector.broadcast %cst_23 : f32 to vector<8x128xf32>
    %63 = vector.broadcast %cst_24 : f32 to vector<8x128xf32>
    %64 = arith.select %61, %62, %63 : vector<8x128xi1>, vector<8x128xf32>
    %cst_25 = arith.constant 0.899999976 : f32
    %65 = vector.broadcast %cst_25 : f32 to vector<8x128xf32>
    %66 = arith.select %56, %65, %64 : vector<8x128xi1>, vector<8x128xf32>
    %67 = arith.mulf %66, %13 : vector<8x128xf32>
    %68 = arith.addf %54, %67 : vector<8x128xf32>
    %c2_i32 = arith.constant 2 : i32
    %69 = vector.broadcast %c2_i32 : i32 to vector<8x128xi32>
    %70 = arith.cmpi eq, %1, %69 : vector<8x128xi32>
    %c2_i32_26 = arith.constant 2 : i32
    %71 = vector.broadcast %c2_i32_26 : i32 to vector<8x128xi32>
    %72 = arith.cmpi eq, %5, %71 : vector<8x128xi32>
    %c2_i32_27 = arith.constant 2 : i32
    %73 = vector.broadcast %c2_i32_27 : i32 to vector<8x128xi32>
    %74 = arith.cmpi eq, %9, %73 : vector<8x128xi32>
    %75 = arith.ori %72, %74 : vector<8x128xi1>
    %cst_28 = arith.constant 5.000000e-02 : f32
    %cst_29 = arith.constant 0.000000e+00 : f32
    %76 = vector.broadcast %cst_28 : f32 to vector<8x128xf32>
    %77 = vector.broadcast %cst_29 : f32 to vector<8x128xf32>
    %78 = arith.select %75, %76, %77 : vector<8x128xi1>, vector<8x128xf32>
    %cst_30 = arith.constant 0.899999976 : f32
    %79 = vector.broadcast %cst_30 : f32 to vector<8x128xf32>
    %80 = arith.select %70, %79, %78 : vector<8x128xi1>, vector<8x128xf32>
    %81 = arith.mulf %80, %15 : vector<8x128xf32>
    %82 = arith.addf %68, %81 : vector<8x128xf32>
    %c3_i32 = arith.constant 3 : i32
    %83 = vector.broadcast %c3_i32 : i32 to vector<8x128xi32>
    %84 = arith.cmpi eq, %1, %83 : vector<8x128xi32>
    %c3_i32_31 = arith.constant 3 : i32
    %85 = vector.broadcast %c3_i32_31 : i32 to vector<8x128xi32>
    %86 = arith.cmpi eq, %5, %85 : vector<8x128xi32>
    %c3_i32_32 = arith.constant 3 : i32
    %87 = vector.broadcast %c3_i32_32 : i32 to vector<8x128xi32>
    %88 = arith.cmpi eq, %9, %87 : vector<8x128xi32>
    %89 = arith.ori %86, %88 : vector<8x128xi1>
    %cst_33 = arith.constant 5.000000e-02 : f32
    %cst_34 = arith.constant 0.000000e+00 : f32
    %90 = vector.broadcast %cst_33 : f32 to vector<8x128xf32>
    %91 = vector.broadcast %cst_34 : f32 to vector<8x128xf32>
    %92 = arith.select %89, %90, %91 : vector<8x128xi1>, vector<8x128xf32>
    %cst_35 = arith.constant 0.899999976 : f32
    %93 = vector.broadcast %cst_35 : f32 to vector<8x128xf32>
    %94 = arith.select %84, %93, %92 : vector<8x128xi1>, vector<8x128xf32>
    %95 = arith.mulf %94, %17 : vector<8x128xf32>
    %96 = arith.addf %82, %95 : vector<8x128xf32>
    %c4_i32_36 = arith.constant 4 : i32
    %97 = vector.broadcast %c4_i32_36 : i32 to vector<8x128xi32>
    %98 = arith.cmpi eq, %1, %97 : vector<8x128xi32>
    %c4_i32_37 = arith.constant 4 : i32
    %99 = vector.broadcast %c4_i32_37 : i32 to vector<8x128xi32>
    %100 = arith.cmpi eq, %5, %99 : vector<8x128xi32>
    %c4_i32_38 = arith.constant 4 : i32
    %101 = vector.broadcast %c4_i32_38 : i32 to vector<8x128xi32>
    %102 = arith.cmpi eq, %9, %101 : vector<8x128xi32>
    %103 = arith.ori %100, %102 : vector<8x128xi1>
    %cst_39 = arith.constant 5.000000e-02 : f32
    %cst_40 = arith.constant 0.000000e+00 : f32
    %104 = vector.broadcast %cst_39 : f32 to vector<8x128xf32>
    %105 = vector.broadcast %cst_40 : f32 to vector<8x128xf32>
    %106 = arith.select %103, %104, %105 : vector<8x128xi1>, vector<8x128xf32>
    %cst_41 = arith.constant 0.899999976 : f32
    %107 = vector.broadcast %cst_41 : f32 to vector<8x128xf32>
    %108 = arith.select %98, %107, %106 : vector<8x128xi1>, vector<8x128xf32>
    %109 = arith.mulf %108, %19 : vector<8x128xf32>
    %110 = arith.addf %96, %109 : vector<8x128xf32>
    %c0_i32_42 = arith.constant 0 : i32
    %111 = vector.broadcast %c0_i32_42 : i32 to vector<8x128xi32>
    %112 = arith.cmpi eq, %1, %111 : vector<8x128xi32>
    %c4_i32_43 = arith.constant 4 : i32
    %113 = vector.broadcast %c4_i32_43 : i32 to vector<8x128xi32>
    %114 = arith.cmpi eq, %1, %113 : vector<8x128xi32>
    %115 = arith.ori %112, %114 : vector<8x128xi1>
    %116 = arith.extui %115 : vector<8x128xi1> to vector<8x128xi32>
    %117 = arith.sitofp %116 : vector<8x128xi32> to vector<8x128xf32>
    %cst_44 = arith.constant 5.000000e-02 : f32
    %118 = vector.broadcast %cst_44 : f32 to vector<8x128xf32>
    %119 = arith.mulf %118, %117 : vector<8x128xf32>
    %cst_45 = arith.constant 1.000000e+00 : f32
    %120 = vector.broadcast %cst_45 : f32 to vector<8x128xf32>
    %121 = arith.subf %120, %119 : vector<8x128xf32>
    %122 = arith.mulf %121, %39 : vector<8x128xf32>
    %123 = arith.subf %122, %110 : vector<8x128xf32>
    %124 = tpu.iota {dimensions = array<i32: 0>} : vector<8x128xi32>
    %125 = tpu.iota {dimensions = array<i32: 1>} : vector<8x128xi32>
    %c1024_i32 = arith.constant 1024 : i32
    %126 = arith.muli %arg0, %c1024_i32 : i32
    %c128_i32 = arith.constant 128 : i32
    %127 = vector.broadcast %c128_i32 : i32 to vector<8x128xi32>
    %128 = arith.muli %124, %127 : vector<8x128xi32>
    %129 = vector.broadcast %126 : i32 to vector<8x128xi32>
    %130 = arith.addi %129, %128 : vector<8x128xi32>
    %c0_i32_46 = arith.constant 0 : i32
    %131 = vector.broadcast %c0_i32_46 : i32 to vector<8x128xi32>
    %132 = arith.addi %130, %131 : vector<8x128xi32>
    %133 = arith.addi %132, %125 : vector<8x128xi32>
    %c8_i32 = arith.constant 8 : i32
    %134 = vector.broadcast %c8_i32 : i32 to vector<8x128xi32>
    %135 = arith.cmpi slt, %133, %134 : vector<8x128xi32>
    %cst_47 = arith.constant 0.000000e+00 : f32
    %136 = vector.broadcast %cst_47 : f32 to vector<8x128xf32>
    %137 = arith.select %135, %123, %136 : vector<8x128xi1>, vector<8x128xf32>
    %138 = arith.addf %0, %137 : vector<8x128xf32>
    %c0_48 = arith.constant 0 : index
    %c0_49 = arith.constant 0 : index
    %139 = vector.load %arg3[%c0_48, %c0_49] : memref<8x128xf32, #tpu.memory_space<vmem>>, vector<8x128xf32>
    tpu.vector_store %arg3[%c0_48, %c0_49], %138 {strides = array<i32>} : memref<8x128xf32, #tpu.memory_space<vmem>>, vector<8x128xf32>,
    return
  }
  func.func @transform_0(%arg0: i32) -> (i32, i32) {
    %c0_i32 = arith.constant 0 : i32
    %c0_i32_0 = arith.constant 0 : i32
    return %arg0, %c0_i32 : i32, i32
  }
  func.func @transform_1(%arg0: i32) -> (i32, i32, i32) {
    %c0_i32 = arith.constant 0 : i32
    %c0_i32_0 = arith.constant 0 : i32
    %c0_i32_1 = arith.constant 0 : i32
    return %c0_i32, %arg0, %c0_i32_0 : i32, i32, i32
  }
  func.func @transform_2(%arg0: i32) -> (i32, i32) {
    %c0_i32 = arith.constant 0 : i32
    %c0_i32_0 = arith.constant 0 : i32
    return %arg0, %c0_i32 : i32, i32
  }
}

</mosaic_0001>

<llo_original>
// kernel: tpu_custom_call.1
$region0: #{tpu_custom_call.1}
  #allocation0 [shape = 'u32[]', space=smem, size = 0x4, offset = 0x4, fixed_abs, tag = 'smem constant byte address 0x4 - core index']
  #allocation1 [shape = 'u32[144,128]{1,0:T(1,128)}', space=vmem, size = 0x12000, scoped, tag = 'internal scratch']
  %s0 = inlined_call_operand.hbm [shape: s32[8,128], index: 0, kind: input, shape index: {}]
  %s1 = inlined_call_operand.hbm [shape: f32[5,8,128], index: 1, kind: input, shape index: {}]
  %s2 = inlined_call_operand.hbm [shape: f32[8,128], index: 2, kind: output, shape index: {}]
  %s3 = sld [smem:[#allocation0]]
  $region26: #{tpu_custom_call.1} parent=0
    _
  %s5 = ssub.s32 1, %s3
  %s6 = scalar_select 0, %s5, %s3
  $region1: #{tpu_custom_call.1} parent=0
    #allocation2 [shape = 'u8[4096]{0}', space=vmem, size = 0x1000, scoped, tag = 'input window, operand 0, single buffered']
    #allocation3 [shape = 's32[1]{0}', space=sflag, size = 0x4, scoped, tag = 'scoped memory for tpu_custom_call.1']
    #allocation4 [shape = 's32[1]{0}', space=sflag, size = 0x4, scoped, tag = 'scoped memory for tpu_custom_call.1']
    #allocation5 [shape = 'u8[20480]{0}', space=vmem, size = 0x5000, scoped, tag = 'input window, operand 1, single buffered']
    #allocation6 [shape = 's32[1]{0}', space=sflag, size = 0x4, scoped, tag = 'scoped memory for tpu_custom_call.1']
    #allocation7 [shape = 'u8[4096]{0}', space=vmem, size = 0x1000, scoped, tag = 'output window, operand 0, single buffered']
    %7 = vsyncpa [#allocation3], 0
    %8 = vsyncpa [#allocation6], 0
    %9 = vsyncpa [#allocation4], 0
    // Predicated region
    $region2: #{tpu_custom_call.1} parent=1 // pred_check
      _
    $region3: #{tpu_custom_call.1} parent=1 // pred_check_branch
      %11 = sbr.rel (0) target = $region5
    $region4: #{tpu_custom_call.1} parent=1 // pred_region
      %s13 = ssub.s32 128, 128
      %14 = vsyncadd [#allocation3], %s13
      %s16 = sshll.u32 [#allocation2], 4
      %s17 = int_to_ptr.vmem [resolvable:$true] %s16
      %19 = dma.hbm_to_vmem [thread:$0]  %s0, 128, %s17, [#allocation3]
    $region5: #{tpu_custom_call.1} parent=1 // pred_fallthru
      _
    // Predicated region
    $region6: #{tpu_custom_call.1} parent=1 // pred_check
      _
    $region7: #{tpu_custom_call.1} parent=1 // pred_check_branch
      %21 = sbr.rel (0) target = $region9
    $region8: #{tpu_custom_call.1} parent=1 // pred_region
      %s23 = ssub.s32 640, 640
      %24 = vsyncadd [#allocation6], %s23
      %s25 = sshll.u32 [#allocation5], 4
      %s26 = int_to_ptr.vmem [resolvable:$true] %s25
      %31 = dma.hbm_to_vmem [thread:$0]  %s1, 640, %s26, [#allocation6], 128, 128, 8
    $region9: #{tpu_custom_call.1} parent=1 // pred_fallthru
      _
    // Predicated region
    $region10: #{tpu_custom_call.1} parent=1 // pred_check
      _
    $region11: #{tpu_custom_call.1} parent=1 // pred_check_branch
      %33 = sbr.rel (0) target = $region13
    $region12: #{tpu_custom_call.1} parent=1 // pred_region
      %34 = dma.done [#allocation3], 128
    $region13: #{tpu_custom_call.1} parent=1 // pred_fallthru
      _
    // Predicated region
    $region14: #{tpu_custom_call.1} parent=1 // pred_check
      _
    $region15: #{tpu_custom_call.1} parent=1 // pred_check_branch
      %36 = sbr.rel (0) target = $region17
    $region16: #{tpu_custom_call.1} parent=1 // pred_region
      %37 = dma.done [#allocation6], 640
    $region17: #{tpu_custom_call.1} parent=1 // pred_fallthru
      _
    %v38 = vld [vmem:[#allocation2] sm:$0xff]
    %v39 = vsub.s32 %v38, 1
    %vm40 = vcmp.gt.s32.totalorder %v39, 0
    %v41 = vsel %vm40, %v39, 0
    %v42 = vadd.s32 %v38, 1
    %vm43 = vcmp.lt.s32.totalorder %v42, 4
    %v44 = vsel %vm43, %v42, 4
    %v45 = vld [vmem:[#allocation5] sm:$0xff]
    %s46 = scalar_lea.vmem [#allocation5], 8
    %v47 = vld [vmem:[%s46] sm:$0xff]
    %s48 = scalar_lea.vmem [#allocation5], 16
    %v49 = vld [vmem:[%s48] sm:$0xff]
    %s50 = scalar_lea.vmem [#allocation5], 24
    %v51 = vld [vmem:[%s50] sm:$0xff]
    %s52 = scalar_lea.vmem [#allocation5], 32
    %v53 = vld [vmem:[%s52] sm:$0xff]
    %v54 = vmax.f32 %v45, %v47
    %v55 = vmax.f32 %v54, %v49
    %v56 = vmax.f32 %v55, %v51
    %v57 = vmax.f32 %v56, %v53
    %v58 = vsub.f32 %v45, %v57
    %v59 = vmul.f32 %v58, 1.442695
    %v60 = vpow.pop %v59
    %v61 = vsub.f32 %v47, %v57
    %v62 = vmul.f32 %v61, 1.442695
    %v63 = vpow.pop %v62
    %v64 = vadd.f32 %v60, %v63
    %v65 = vsub.f32 %v49, %v57
    %v66 = vmul.f32 %v65, 1.442695
    %v67 = vpow.pop %v66
    %v68 = vadd.f32 %v64, %v67
    %v69 = vsub.f32 %v51, %v57
    %v70 = vmul.f32 %v69, 1.442695
    %v71 = vpow.pop %v70
    %v72 = vadd.f32 %v68, %v71
    %v73 = vsub.f32 %v53, %v57
    %v74 = vmul.f32 %v73, 1.442695
    %v75 = vpow.pop %v74
    %v76 = vadd.f32 %v72, %v75
    %v77 = vlog2.pop %v76
    %v78 = vmul.f32 %v77, 0.6931472
    %v79 = vadd.f32 %v57, %v78
    %vm80 = vcmp.eq.s32.totalorder %v38, 0
    %vm81 = vcmp.eq.s32.totalorder %v41, 0
    %vm82 = vcmp.eq.s32.totalorder %v44, 0
    %vm83 = vmor %vm81, %vm82
    %v84 = vsel %vm83, 0.05, 0.0
    %v85 = vsel %vm80, 0.9, %v84
    %v86 = vmul.f32 %v85, %v45
    %v87 = vadd.f32 %v86, 0.0
    %vm88 = vcmp.eq.s32.totalorder %v38, 1
    %vm89 = vcmp.eq.s32.totalorder %v41, 1
    %vm90 = vcmp.eq.s32.totalorder %v44, 1
    %vm91 = vmor %vm89, %vm90
    %v92 = vsel %vm91, 0.05, 0.0
    %v93 = vsel %vm88, 0.9, %v92
    %v94 = vmul.f32 %v93, %v47
    %v95 = vadd.f32 %v87, %v94
    %vm96 = vcmp.eq.s32.totalorder %v38, 2
    %vm97 = vcmp.eq.s32.totalorder %v41, 2
    %vm98 = vcmp.eq.s32.totalorder %v44, 2
    %vm99 = vmor %vm97, %vm98
    %v100 = vsel %vm99, 0.05, 0.0
    %v101 = vsel %vm96, 0.9, %v100
    %v102 = vmul.f32 %v101, %v49
    %v103 = vadd.f32 %v95, %v102
    %vm104 = vcmp.eq.s32.totalorder %v38, 3
    %vm105 = vcmp.eq.s32.totalorder %v41, 3
    %vm106 = vcmp.eq.s32.totalorder %v44, 3
    %vm107 = vmor %vm105, %vm106
    %v108 = vsel %vm107, 0.05, 0.0
    %v109 = vsel %vm104, 0.9, %v108
    %v110 = vmul.f32 %v109, %v51
    %v111 = vadd.f32 %v103, %v110
    %vm112 = vcmp.eq.s32.totalorder %v38, 4
    %vm113 = vcmp.eq.s32.totalorder %v41, 4
    %vm114 = vcmp.eq.s32.totalorder %v44, 4
    %vm115 = vmor %vm113, %vm114
    %v116 = vsel %vm115, 0.05, 0.0
    %v117 = vsel %vm112, 0.9, %v116
    %v118 = vmul.f32 %v117, %v53
    %v119 = vadd.f32 %v111, %v118
    %vm120 = vmor %vm80, %vm112
    %v121 = vsel %vm120, 1, 0
    %v122 = vcvt.s32.f32 %v121
    %v123 = vmul.f32 %v122, 0.05
    %v124 = vsub.f32 1.0, %v123
    %v125 = vmul.f32 %v124, %v79
    %v126 = vsub.f32 %v125, %v119
    %v127 = vlaneseq
    %v128 = vshrl.u32 %v127, 7
    %v129 = vlaneseq
    %v130 = vand.u32 %v129, 127
    %s131 = smul.u32 0, 1024
    %v132 = vmul.u32 %v128, 128
    %v133 = vstv %s131
    %v134 = vadd.s32 %v133, %v132
    %v135 = vadd.s32 %v134, %v130
    %vm136 = vcmp.lt.s32.totalorder %v135, 8
    %v137 = vsel %vm136, %v126, 0.0
    %v138 = vadd.f32 %v137, 0.0
    %139 = vst [vmem:[#allocation7] sm:$0xff] %v138
    // Predicated region
    $region18: #{tpu_custom_call.1} parent=1 // pred_check
      _
    $region19: #{tpu_custom_call.1} parent=1 // pred_check_branch
      %141 = sbr.rel (0) target = $region21
    $region20: #{tpu_custom_call.1} parent=1 // pred_region
      %s143 = ssub.s32 128, 128
      %144 = vsyncadd [#allocation4], %s143
      %s146 = sshll.u32 [#allocation7], 4
      %s147 = int_to_ptr.vmem [resolvable:$true] %s146
      %149 = dma.vmem_to_hbm [thread:$0]  %s147, 128, %s2, [#allocation4]
    $region21: #{tpu_custom_call.1} parent=1 // pred_fallthru
      _
    // Predicated region
    $region22: #{tpu_custom_call.1} parent=1 // pred_check
      _
    $region23: #{tpu_custom_call.1} parent=1 // pred_check_branch
      %151 = sbr.rel (0) target = $region25
    $region24: #{tpu_custom_call.1} parent=1 // pred_region
      %152 = dma.done [#allocation4], 128
    $region25: #{tpu_custom_call.1} parent=1 // pred_fallthru
      _
    %153 = vsyncpa [#allocation3], 1
    %154 = vsyncpa [#allocation6], 1
    %155 = vsyncpa [#allocation4], 1

</llo_original>
